<compile_context>
chip_gen: v5e
topology: v5e:2x2
jax: 0.10.0
libtpu: 0.0.40
codegen_flags: <defaults>
</compile_context>

<pallas_src>
import functools
import math

import jax
import jax.numpy as jnp
from jax.experimental import pallas as pl
from jax.experimental.pallas import tpu as pltpu


# ----------------------------------------------------------------------------
# helpers
# ----------------------------------------------------------------------------
def _acc_dtype(dtype):
    return jnp.float32 if jnp.issubdtype(jnp.dtype(dtype), jnp.floating) else jnp.int32


def _divisors(n):
    small, large = [], []
    d = 1
    while d * d <= n:
        if n % d == 0:
            small.append(d)
            if d != n // d:
                large.append(n // d)
        d += 1
    return small + large[::-1]


def _largest_div(n, cap, mult=1):
    """Largest divisor of n that is <= cap and a multiple of `mult` (None if none)."""
    best = None
    for d in _divisors(n):
        if d <= cap and d % mult == 0:
            best = d
    return best


def _largest_div_pred(n, cap, pred):
    best = None
    for d in _divisors(n):
        if d <= cap and pred(d):
            best = d
    return best


@functools.lru_cache(maxsize=None)
def _vmem_budget():
    """(vmem_limit_bytes, block budget) tuned per TPU generation."""
    try:
        info = pltpu.get_tpu_info()
        cap = int(getattr(info, "vmem_capacity_bytes", 0) or 0)
    except Exception:
        cap = 0
    if cap <= 0:
        cap = 64 * 1024 * 1024          # conservative: v7x physical VMEM per core
    limit = min((cap * 3) // 4, 96 * 1024 * 1024)
    budget = max(8 * 1024 * 1024, limit - 8 * 1024 * 1024)   # headroom for Mosaic
    return limit, budget


# ----------------------------------------------------------------------------
# kernel 1: reduce the middle axis of a (pre, red, post) view
# ----------------------------------------------------------------------------
def _sum_mid_kernel(x_ref, o_ref, *scratch, single_step):
    acc_dt = _acc_dtype(x_ref.dtype)
    tb, tr, tc = x_ref.shape
    n_full, rem = tr // 8, tr % 8

    def slab_partial():
        # (tb, 8, tc) partial: whole-vreg VPU adds of 8-sublane slabs, cast per slab.
        def body(j, a):
            start = pl.multiple_of(j * 8, 8)
            return a + x_ref[:, pl.ds(start, 8), :].astype(acc_dt)
        return jax.lax.fori_loop(0, n_full, body,
                                 jnp.zeros((tb, 8, tc), acc_dt),
                                 unroll=n_full <= 16)

    tail = None
    if rem:
        tail = x_ref[:, pl.ds(n_full * 8, rem), :].astype(acc_dt)

    keep = len(o_ref.shape) == 3

    def collapse(acc, extra):
        total = jnp.sum(acc, axis=1, keepdims=keep)
        if extra is not None:
            total = total + jnp.sum(extra, axis=1, keepdims=keep)
        return total.astype(o_ref.dtype)

    if single_step:
        acc = slab_partial() if n_full else jnp.zeros((tb, 8, tc), acc_dt)
        o_ref[...] = collapse(acc, tail)
    else:
        (acc_ref,) = scratch
        r = pl.program_id(2)
        partial = slab_partial() if n_full else None

        @pl.when(r == 0)
        def _():
            acc_ref[...] = (partial if partial is not None
                            else jnp.zeros((tb, 8, tc), acc_dt))

        if partial is not None:
            @pl.when(r > 0)
            def _():
                acc_ref[...] += partial

        if tail is not None:
            acc_ref[:, 0:rem, :] += tail

        @pl.when(r == pl.num_programs(2) - 1)
        def _():
            o_ref[...] = collapse(acc_ref[...], None)


def _sum_mid_pallas(x3):
    """Sum over axis 1 of (P, R, C); returns (P, C) (or (P, 1, C) fallback)."""
    P, R, C = x3.shape
    itemsize = jnp.dtype(x3.dtype).itemsize
    acc_dt = _acc_dtype(x3.dtype)
    acc_item = jnp.dtype(acc_dt).itemsize
    limit, budget = _vmem_budget()

    # Lane (last) dim: multiple of 128 (or full dim), capped so the accumulator
    # stays small and the budget goes into reduction depth instead of width.
    lane_cap = 2048
    hard_c = max(128, budget // (24 * max(itemsize, acc_item)))
    if C % 128 == 0:
        tile_c = _largest_div(C, max(128, min(lane_cap, hard_c)), mult=128) or C
    else:
        tile_c = C  # full dim is the only exact tiling; lane-masked if C % 128 != 0

    # Reduction dim: as deep as the budget allows (multiple of 8, or full dim).
    # Footprint model: 2x input block + f32 accumulator + 2x output block.
    fixed = 8 * tile_c * acc_item + 2 * tile_c * itemsize
    per_row = 2 * tile_c * itemsize
    max_r = max(8, (budget - fixed) // per_row)
    tile_r = R if R <= max_r else (_largest_div(R, max_r, mult=8) or R)

    # Batch (leading) dim: fold what still fits. 2-D (P, C) output keeps stores
    # sublane-dense but needs tile_b % 8 == 0 or tile_b == P.
    per_b = 2 * tile_r * tile_c * itemsize + fixed
    max_b = max(1, budget // per_b)
    tile_b = _largest_div_pred(P, max_b, lambda d: d % 8 == 0 or d == P)
    out_2d = tile_b is not None
    if tile_b is None:
        tile_b = _largest_div(P, max_b) or 1

    # Megacore: keep >= 2 parallel (b, c) blocks when cheaply possible.
    while (P // tile_b) * (C // tile_c) < 2:
        if tile_b % 2 == 0 and (not out_2d or (tile_b // 2) % 8 == 0):
            tile_b //= 2
        elif tile_c % 256 == 0:
            tile_c //= 2
        else:
            break

    grid = (P // tile_b, C // tile_c, R // tile_r)
    single_step = grid[2] == 1

    if out_2d:
        out_shape = jax.ShapeDtypeStruct((P, C), x3.dtype)
        out_spec = pl.BlockSpec((tile_b, tile_c), lambda b, c, r: (b, c))
    else:
        out_shape = jax.ShapeDtypeStruct((P, 1, C), x3.dtype)
        out_spec = pl.BlockSpec((tile_b, 1, tile_c), lambda b, c, r: (b, 0, c))

    scratch = [] if single_step else [pltpu.VMEM((tile_b, 8, tile_c), acc_dt)]

    return pl.pallas_call(
        functools.partial(_sum_mid_kernel, single_step=single_step),
        out_shape=out_shape,
        grid_spec=pltpu.PrefetchScalarGridSpec(
            num_scalar_prefetch=0,
            grid=grid,
            in_specs=[pl.BlockSpec((tile_b, tile_r, tile_c),
                                   lambda b, c, r: (b, r, c))],
            out_specs=out_spec,
            scratch_shapes=scratch,
        ),
        compiler_params=pltpu.CompilerParams(
            dimension_semantics=("parallel", "parallel", "arbitrary"),
            vmem_limit_bytes=limit,
        ),
    )(x3)


# ----------------------------------------------------------------------------
# kernel 2: reduce the last (lane) axis of a (pre, red) view
# ----------------------------------------------------------------------------
def _sum_last_kernel(x_ref, o_ref, *scratch, single_step):
    acc_dt = _acc_dtype(x_ref.dtype)
    tp, tr = x_ref.shape
    n_full, rem = tr // 128, tr % 128

    def slab_partial():
        # (tp, 128) partial: whole-vreg VPU adds of 128-lane slabs.
        def body(j, a):
            start = pl.multiple_of(j * 128, 128)
            return a + x_ref[:, pl.ds(start, 128)].astype(acc_dt)
        return jax.lax.fori_loop(0, n_full, body,
                                 jnp.zeros((tp, 128), acc_dt),
                                 unroll=n_full <= 16)

    tail = None
    if rem:
        tail = x_ref[:, pl.ds(n_full * 128, rem)].astype(acc_dt)

    def collapse(acc, extra):
        total = jnp.sum(acc, axis=1, keepdims=True)   # single cross-lane collapse
        if extra is not None:
            total = total + jnp.sum(extra, axis=1, keepdims=True)
        return total.astype(o_ref.dtype)

    if single_step:
        acc = slab_partial() if n_full else jnp.zeros((tp, 128), acc_dt)
        o_ref[...] = collapse(acc, tail)
    else:
        (acc_ref,) = scratch
        r = pl.program_id(1)
        partial = slab_partial() if n_full else None

        @pl.when(r == 0)
        def _():
            acc_ref[...] = (partial if partial is not None
                            else jnp.zeros((tp, 128), acc_dt))

        if partial is not None:
            @pl.when(r > 0)
            def _():
                acc_ref[...] += partial

        if tail is not None:
            acc_ref[:, 0:rem] += tail

        @pl.when(r == pl.num_programs(1) - 1)
        def _():
            o_ref[...] = collapse(acc_ref[...], None)


def _sum_last_pallas(x2):
    """Sum over the last axis of (P, R); returns (P, 1)."""
    P, R = x2.shape
    itemsize = jnp.dtype(x2.dtype).itemsize
    acc_dt = _acc_dtype(x2.dtype)
    acc_item = jnp.dtype(acc_dt).itemsize
    limit, budget = _vmem_budget()

    # Reduction dim lives on the 128-lane axis: full extent when it fits
    # (single pass, no inter-step accumulator), else a 128-multiple divisor.
    hard_r = max(128, budget // (16 * itemsize))
    tile_r = R if R <= hard_r else (_largest_div(R, hard_r, mult=128) or R)

    per_p = 2 * tile_r * itemsize + 128 * acc_item + 2 * itemsize
    max_p = max(1, budget // per_p)
    legal = lambda d: d % 8 == 0 or d == P
    tile_p = _largest_div_pred(P, max_p, legal)
    if tile_p is None:
        tile_p = min(d for d in _divisors(P) if legal(d))

    # Megacore: >= 2 parallel row-blocks when the split stays 8-aligned.
    while (P // tile_p) < 2 and tile_p % 2 == 0 and (tile_p // 2) % 8 == 0:
        tile_p //= 2

    grid = (P // tile_p, R // tile_r)
    single_step = grid[1] == 1
    scratch = [] if single_step else [pltpu.VMEM((tile_p, 128), acc_dt)]

    return pl.pallas_call(
        functools.partial(_sum_last_kernel, single_step=single_step),
        out_shape=jax.ShapeDtypeStruct((P, 1), x2.dtype),
        grid_spec=pltpu.PrefetchScalarGridSpec(
            num_scalar_prefetch=0,
            grid=grid,
            in_specs=[pl.BlockSpec((tile_p, tile_r), lambda p, r: (p, r))],
            out_specs=pl.BlockSpec((tile_p, 1), lambda p, r: (p, 0)),
            scratch_shapes=scratch,
        ),
        compiler_params=pltpu.CompilerParams(
            dimension_semantics=("parallel", "arbitrary"),
            vmem_limit_bytes=limit,
        ),
    )(x2)


# ----------------------------------------------------------------------------
# public wrapper: torch.sum(x, dim=dim, keepdim=True)
# ----------------------------------------------------------------------------
def sum_reduce(x: jax.Array, dim: int) -> jax.Array:
    shape = x.shape
    dim = dim % len(shape)
    pre = math.prod(shape[:dim])
    red = shape[dim]
    post = math.prod(shape[dim + 1:])
    out_shape = shape[:dim] + (1,) + shape[dim + 1:]

    if red == 1:
        return x.reshape(out_shape)

    if post == 1:
        out = _sum_last_pallas(x.reshape(pre, red))                 # (pre, 1)
    elif post < 32:
        # Small trailing extent: move the reduction onto the 128-lane axis
        # instead of wasting (128/post)x of every vreg on masked lanes.
        x2 = jnp.swapaxes(x.reshape(pre, red, post), 1, 2).reshape(pre * post, red)
        out = _sum_last_pallas(x2)                                  # (pre*post, 1)
    else:
        out = _sum_mid_pallas(x.reshape(pre, red, post))            # (pre, post)
    return out.reshape(out_shape)


if __name__ == "__main__":
    key = jax.random.PRNGKey(0)
    x = jax.random.normal(key, (4, 64, 128), dtype=jnp.float32)

    # mid-axis, last-axis, and leading-axis reductions
    for dim in (1, 2, 0):
        out = jax.block_until_ready(sum_reduce(x, dim))
        ref = jnp.sum(x, axis=dim, keepdims=True)
        assert out.shape == ref.shape, (dim, out.shape, ref.shape)
        assert jnp.allclose(out, ref, atol=1e-4, rtol=1e-4), f"mismatch for dim={dim}"

    # small trailing-extent path (post < 32): reduction moved onto the lane axis
    y = jax.random.normal(jax.random.PRNGKey(1), (4, 64, 8), dtype=jnp.float32)
    out = jax.block_until_ready(sum_reduce(y, 1))
    ref = jnp.sum(y, axis=1, keepdims=True)
    assert out.shape == ref.shape
    assert jnp.allclose(out, ref, atol=1e-4, rtol=1e-4), "mismatch for small-post path"

    print("KERNEL_OK")
</pallas_src>

<mosaic_0001>
module attributes {stable_mosaic.version = 11 : i64} {
  func.func @_sum_mid_kernel(%arg0: i32, %arg1: i32, %arg2: i32, %arg3: memref<4x64x128xf32, #tpu.memory_space<vmem>>, %arg4: memref<4x128xf32, #tpu.memory_space<vmem>>) attributes {dimension_semantics = [#tpu.dimension_semantics<parallel>, #tpu.dimension_semantics<parallel>, #tpu.dimension_semantics<arbitrary>], iteration_bounds = array<i64: 1, 1, 1>, scalar_prefetch = 0 : i64, scratch_operands = 0 : i64, tpu.core_type = #tpu.core_type<tc>, window_params = [{transform_indices = @transform_0, window_bounds = array<i64: 4, 64, 128>}, {transform_indices = @transform_1, window_bounds = array<i64: 4, 128>}]} {
    %cst = arith.constant 0.000000e+00 : f32
    %0 = vector.broadcast %cst : f32 to vector<4x8x128xf32>
    %c0_i32 = arith.constant 0 : i32
    %c8_i32 = arith.constant 8 : i32
    %1 = arith.muli %c0_i32, %c8_i32 : i32
    %2 = tpu.assume_multiple %1, 8 : i32
    %c0 = arith.constant 0 : index
    %3 = arith.index_cast %2 : i32 to index
    %c0_0 = arith.constant 0 : index
    %4 = vector.load %arg3[%c0, %3, %c0_0] : memref<4x64x128xf32, #tpu.memory_space<vmem>>, vector<4x8x128xf32>
    %5 = arith.addf %0, %4 : vector<4x8x128xf32>
    %c1_i32 = arith.constant 1 : i32
    %c8_i32_1 = arith.constant 8 : i32
    %6 = arith.muli %c1_i32, %c8_i32_1 : i32
    %7 = tpu.assume_multiple %6, 8 : i32
    %c0_2 = arith.constant 0 : index
    %8 = arith.index_cast %7 : i32 to index
    %c0_3 = arith.constant 0 : index
    %9 = vector.load %arg3[%c0_2, %8, %c0_3] : memref<4x64x128xf32, #tpu.memory_space<vmem>>, vector<4x8x128xf32>
    %10 = arith.addf %5, %9 : vector<4x8x128xf32>
    %c2_i32 = arith.constant 2 : i32
    %c8_i32_4 = arith.constant 8 : i32
    %11 = arith.muli %c2_i32, %c8_i32_4 : i32
    %12 = tpu.assume_multiple %11, 8 : i32
    %c0_5 = arith.constant 0 : index
    %13 = arith.index_cast %12 : i32 to index
    %c0_6 = arith.constant 0 : index
    %14 = vector.load %arg3[%c0_5, %13, %c0_6] : memref<4x64x128xf32, #tpu.memory_space<vmem>>, vector<4x8x128xf32>
    %15 = arith.addf %10, %14 : vector<4x8x128xf32>
    %c3_i32 = arith.constant 3 : i32
    %c8_i32_7 = arith.constant 8 : i32
    %16 = arith.muli %c3_i32, %c8_i32_7 : i32
    %17 = tpu.assume_multiple %16, 8 : i32
    %c0_8 = arith.constant 0 : index
    %18 = arith.index_cast %17 : i32 to index
    %c0_9 = arith.constant 0 : index
    %19 = vector.load %arg3[%c0_8, %18, %c0_9] : memref<4x64x128xf32, #tpu.memory_space<vmem>>, vector<4x8x128xf32>
    %20 = arith.addf %15, %19 : vector<4x8x128xf32>
    %c4_i32 = arith.constant 4 : i32
    %c8_i32_10 = arith.constant 8 : i32
    %21 = arith.muli %c4_i32, %c8_i32_10 : i32
    %22 = tpu.assume_multiple %21, 8 : i32
    %c0_11 = arith.constant 0 : index
    %23 = arith.index_cast %22 : i32 to index
    %c0_12 = arith.constant 0 : index
    %24 = vector.load %arg3[%c0_11, %23, %c0_12] : memref<4x64x128xf32, #tpu.memory_space<vmem>>, vector<4x8x128xf32>
    %25 = arith.addf %20, %24 : vector<4x8x128xf32>
    %c5_i32 = arith.constant 5 : i32
    %c8_i32_13 = arith.constant 8 : i32
    %26 = arith.muli %c5_i32, %c8_i32_13 : i32
    %27 = tpu.assume_multiple %26, 8 : i32
    %c0_14 = arith.constant 0 : index
    %28 = arith.index_cast %27 : i32 to index
    %c0_15 = arith.constant 0 : index
    %29 = vector.load %arg3[%c0_14, %28, %c0_15] : memref<4x64x128xf32, #tpu.memory_space<vmem>>, vector<4x8x128xf32>
    %30 = arith.addf %25, %29 : vector<4x8x128xf32>
    %c6_i32 = arith.constant 6 : i32
    %c8_i32_16 = arith.constant 8 : i32
    %31 = arith.muli %c6_i32, %c8_i32_16 : i32
    %32 = tpu.assume_multiple %31, 8 : i32
    %c0_17 = arith.constant 0 : index
    %33 = arith.index_cast %32 : i32 to index
    %c0_18 = arith.constant 0 : index
    %34 = vector.load %arg3[%c0_17, %33, %c0_18] : memref<4x64x128xf32, #tpu.memory_space<vmem>>, vector<4x8x128xf32>
    %35 = arith.addf %30, %34 : vector<4x8x128xf32>
    %c7_i32 = arith.constant 7 : i32
    %c8_i32_19 = arith.constant 8 : i32
    %36 = arith.muli %c7_i32, %c8_i32_19 : i32
    %37 = tpu.assume_multiple %36, 8 : i32
    %c0_20 = arith.constant 0 : index
    %38 = arith.index_cast %37 : i32 to index
    %c0_21 = arith.constant 0 : index
    %39 = vector.load %arg3[%c0_20, %38, %c0_21] : memref<4x64x128xf32, #tpu.memory_space<vmem>>, vector<4x8x128xf32>
    %40 = arith.addf %35, %39 : vector<4x8x128xf32>
    %c8_i32_22 = arith.constant 8 : i32
    %cst_23 = arith.constant dense<0.000000e+00> : vector<4x128xf32>
    %41 = vector.multi_reduction <add>, %40, %cst_23 [1] : vector<4x8x128xf32> to vector<4x128xf32>
    %c0_24 = arith.constant 0 : index
    %c0_25 = arith.constant 0 : index
    %42 = vector.load %arg4[%c0_24, %c0_25] : memref<4x128xf32, #tpu.memory_space<vmem>>, vector<4x128xf32>
    tpu.vector_store %arg4[%c0_24, %c0_25], %41 {strides = array<i32>} : memref<4x128xf32, #tpu.memory_space<vmem>>, vector<4x128xf32>,
    return
  }
  func.func @transform_0(%arg0: i32, %arg1: i32, %arg2: i32) -> (i32, i32, i32) {
    %c0_i32 = arith.constant 0 : i32
    return %arg0, %arg2, %arg1 : i32, i32, i32
  }
  func.func @transform_1(%arg0: i32, %arg1: i32, %arg2: i32) -> (i32, i32) {
    %c0_i32 = arith.constant 0 : i32
    return %arg0, %arg1 : i32, i32
  }
}

</mosaic_0001>

<llo_original>
// kernel: tpu_custom_call.1
$region0: #{tpu_custom_call.1}
  #allocation0 [shape = 'u32[]', space=smem, size = 0x4, offset = 0x4, fixed_abs, tag = 'smem constant byte address 0x4 - core index']
  #allocation1 [shape = 'u32[72,128]{1,0:T(1,128)}', space=vmem, size = 0x9000, scoped, tag = 'internal scratch']
  %s0 = inlined_call_operand.hbm [shape: f32[4,64,128], index: 0, kind: input, shape index: {}]
  %s1 = inlined_call_operand.hbm [shape: f32[4,128], index: 1, kind: output, shape index: {}]
  %s2 = sld [smem:[#allocation0]]
  $region18: #{tpu_custom_call.1} parent=0
    _
  %s4 = ssub.s32 1, %s2
  %s5 = scalar_select 0, %s4, %s2
  $region1: #{tpu_custom_call.1} parent=0
    #allocation2 [shape = 'u8[131072]{0}', space=vmem, size = 0x20000, scoped, tag = 'input window, operand 0, single buffered']
    #allocation3 [shape = 's32[1]{0}', space=sflag, size = 0x4, scoped, tag = 'scoped memory for tpu_custom_call.1']
    #allocation4 [shape = 's32[1]{0}', space=sflag, size = 0x4, scoped, tag = 'scoped memory for tpu_custom_call.1']
    #allocation5 [shape = 'u8[2048]{0}', space=vmem, size = 0x800, scoped, tag = 'output window, operand 0, single buffered']
    %6 = vsyncpa [#allocation3], 0
    %7 = vsyncpa [#allocation4], 0
    // Predicated region
    $region2: #{tpu_custom_call.1} parent=1 // pred_check
      _
    $region3: #{tpu_custom_call.1} parent=1 // pred_check_branch
      %9 = sbr.rel (0) target = $region5
    $region4: #{tpu_custom_call.1} parent=1 // pred_region
      %11 = vsyncadd [#allocation3], 0
      %s12 = sshll.u32 %s0, 4
      %s13 = int_to_ptr.hbm [resolvable:$true] %s12
      %s14 = sshll.u32 [#allocation2], 4
      %s15 = int_to_ptr.vmem [resolvable:$true] %s14
      %20 = dma.hbm_to_vmem [thread:$0]  %s13, 4096, %s15, [#allocation3], 128, 128, 8
    $region5: #{tpu_custom_call.1} parent=1 // pred_fallthru
      _
    // Predicated region
    $region6: #{tpu_custom_call.1} parent=1 // pred_check
      _
    $region7: #{tpu_custom_call.1} parent=1 // pred_check_branch
      %22 = sbr.rel (0) target = $region9
    $region8: #{tpu_custom_call.1} parent=1 // pred_region
      %24 = dma.done [#allocation3], 4096
    $region9: #{tpu_custom_call.1} parent=1 // pred_fallthru
      _
    %v25 = vld [vmem:[#allocation2] sm:$0xff]
    %v26 = vld [vmem:[#allocation2 + $0x40] sm:$0xff]
    %v27 = vld [vmem:[#allocation2 + $0x80] sm:$0xff]
    %v28 = vld [vmem:[#allocation2 + $0xc0] sm:$0xff]
    %v29 = vadd.f32 %v25, 0.0
    %v30 = vadd.f32 %v26, 0.0
    %v31 = vadd.f32 %v27, 0.0
    %v32 = vadd.f32 %v28, 0.0
    %s33 = scalar_lea.vmem [#allocation2], 8
    %v34 = vld [vmem:[%s33] sm:$0xff]
    %v35 = vld [vmem:[%s33 + $0x40] sm:$0xff]
    %v36 = vld [vmem:[%s33 + $0x80] sm:$0xff]
    %v37 = vld [vmem:[%s33 + $0xc0] sm:$0xff]
    %v38 = vadd.f32 %v29, %v34
    %v39 = vadd.f32 %v30, %v35
    %v40 = vadd.f32 %v31, %v36
    %v41 = vadd.f32 %v32, %v37
    %s42 = scalar_lea.vmem [#allocation2], 16
    %v43 = vld [vmem:[%s42] sm:$0xff]
    %v44 = vld [vmem:[%s42 + $0x40] sm:$0xff]
    %v45 = vld [vmem:[%s42 + $0x80] sm:$0xff]
    %v46 = vld [vmem:[%s42 + $0xc0] sm:$0xff]
    %v47 = vadd.f32 %v38, %v43
    %v48 = vadd.f32 %v39, %v44
    %v49 = vadd.f32 %v40, %v45
    %v50 = vadd.f32 %v41, %v46
    %s51 = scalar_lea.vmem [#allocation2], 24
    %v52 = vld [vmem:[%s51] sm:$0xff]
    %v53 = vld [vmem:[%s51 + $0x40] sm:$0xff]
    %v54 = vld [vmem:[%s51 + $0x80] sm:$0xff]
    %v55 = vld [vmem:[%s51 + $0xc0] sm:$0xff]
    %v56 = vadd.f32 %v47, %v52
    %v57 = vadd.f32 %v48, %v53
    %v58 = vadd.f32 %v49, %v54
    %v59 = vadd.f32 %v50, %v55
    %s60 = scalar_lea.vmem [#allocation2], 32
    %v61 = vld [vmem:[%s60] sm:$0xff]
    %v62 = vld [vmem:[%s60 + $0x40] sm:$0xff]
    %v63 = vld [vmem:[%s60 + $0x80] sm:$0xff]
    %v64 = vld [vmem:[%s60 + $0xc0] sm:$0xff]
    %v65 = vadd.f32 %v56, %v61
    %v66 = vadd.f32 %v57, %v62
    %v67 = vadd.f32 %v58, %v63
    %v68 = vadd.f32 %v59, %v64
    %s69 = scalar_lea.vmem [#allocation2], 40
    %v70 = vld [vmem:[%s69] sm:$0xff]
    %v71 = vld [vmem:[%s69 + $0x40] sm:$0xff]
    %v72 = vld [vmem:[%s69 + $0x80] sm:$0xff]
    %v73 = vld [vmem:[%s69 + $0xc0] sm:$0xff]
    %v74 = vadd.f32 %v65, %v70
    %v75 = vadd.f32 %v66, %v71
    %v76 = vadd.f32 %v67, %v72
    %v77 = vadd.f32 %v68, %v73
    %s78 = scalar_lea.vmem [#allocation2], 48
    %v79 = vld [vmem:[%s78] sm:$0xff]
    %v80 = vld [vmem:[%s78 + $0x40] sm:$0xff]
    %v81 = vld [vmem:[%s78 + $0x80] sm:$0xff]
    %v82 = vld [vmem:[%s78 + $0xc0] sm:$0xff]
    %v83 = vadd.f32 %v74, %v79
    %v84 = vadd.f32 %v75, %v80
    %v85 = vadd.f32 %v76, %v81
    %v86 = vadd.f32 %v77, %v82
    %s87 = scalar_lea.vmem [#allocation2], 56
    %v88 = vld [vmem:[%s87] sm:$0xff]
    %v89 = vld [vmem:[%s87 + $0x40] sm:$0xff]
    %v90 = vld [vmem:[%s87 + $0x80] sm:$0xff]
    %v91 = vld [vmem:[%s87 + $0xc0] sm:$0xff]
    %v92 = vadd.f32 %v83, %v88
    %v93 = vadd.f32 %v84, %v89
    %v94 = vadd.f32 %v85, %v90
    %v95 = vadd.f32 %v86, %v91
    %v96 = vrot.slane %v92, 4
    %v97 = vadd.f32 %v92, %v96
    %v98 = vrot.slane %v97, 2
    %v99 = vadd.f32 %v97, %v98
    %v100 = vrot.slane %v99, 1
    %v101 = vadd.f32 %v99, %v100
    %v102 = vrot.slane %v93, 4
    %v103 = vadd.f32 %v93, %v102
    %v104 = vrot.slane %v103, 2
    %v105 = vadd.f32 %v103, %v104
    %v106 = vrot.slane %v105, 1
    %v107 = vadd.f32 %v105, %v106
    %v108 = vrot.slane %v94, 4
    %v109 = vadd.f32 %v94, %v108
    %v110 = vrot.slane %v109, 2
    %v111 = vadd.f32 %v109, %v110
    %v112 = vrot.slane %v111, 1
    %v113 = vadd.f32 %v111, %v112
    %v114 = vrot.slane %v95, 4
    %v115 = vadd.f32 %v95, %v114
    %v116 = vrot.slane %v115, 2
    %v117 = vadd.f32 %v115, %v116
    %v118 = vrot.slane %v117, 1
    %v119 = vadd.f32 %v117, %v118
    %vm124 = vcmask 1041409
    %v125 = vsel %vm124, %v107, %v101
    %vm126 = vcmask 1042434
    %v127 = vsel %vm126, %v113, %v125
    %vm128 = vcmask 1043459
    %v129 = vsel %vm128, %v119, %v127
    %131 = vst [vmem:[#allocation5] sm:$0xf] %v129
    // Predicated region
    $region10: #{tpu_custom_call.1} parent=1 // pred_check
      _
    $region11: #{tpu_custom_call.1} parent=1 // pred_check_branch
      %133 = sbr.rel (0) target = $region13
    $region12: #{tpu_custom_call.1} parent=1 // pred_region
      %135 = vsyncadd [#allocation4], 0
      %s137 = sshll.u32 [#allocation5], 4
      %s138 = int_to_ptr.vmem [resolvable:$true] %s137
      %s139 = sshll.u32 %s1, 4
      %s140 = int_to_ptr.hbm [resolvable:$true] %s139
      %142 = dma.vmem_to_hbm [thread:$0]  %s138, 64, %s140, [#allocation4]
    $region13: #{tpu_custom_call.1} parent=1 // pred_fallthru
      _
    // Predicated region
    $region14: #{tpu_custom_call.1} parent=1 // pred_check
      _
    $region15: #{tpu_custom_call.1} parent=1 // pred_check_branch
      %144 = sbr.rel (0) target = $region17
    $region16: #{tpu_custom_call.1} parent=1 // pred_region
      %146 = dma.done [#allocation4], 64
    $region17: #{tpu_custom_call.1} parent=1 // pred_fallthru
      _
    %147 = vsyncpa [#allocation3], 1
    %148 = vsyncpa [#allocation4], 1

</llo_original>
